<compile_context>
chip_gen: v7x
topology: tpu7x:2x2x1
jax: 0.10.0
libtpu: 0.0.40
codegen_flags: <defaults>
</compile_context>

<pallas_src>
import math
from functools import partial

import jax
import jax.numpy as jnp
from jax import lax
from jax.experimental import pallas as pl
from jax.experimental.pallas import tpu as pltpu


def _base_head_kernel(x_ref, w_ref, b_ref, o_ref, *, inv_hw, global_pool):
    # x_ref: (TILE_N, HW, C)  native dtype (bf16/f32), channels-last feature map
    # w_ref: (K, C)           cls_fc.weight, torch layout (no transpose in HBM)
    # b_ref: (1, K)           cls_fc.bias
    # o_ref: (TILE_N, K)      logits (f32)
    x = x_ref[...].astype(jnp.float32)              # accumulate pool in f32
    if global_pool == "avg":
        pooled = jnp.sum(x, axis=1) * inv_hw        # (TILE_N, C), C stays on lanes
    else:  # "max"  (AdaptiveMaxPool2d((1,1)))
        pooled = jnp.max(x, axis=1)
    logits = lax.dot_general(
        pooled,
        w_ref[...].astype(jnp.float32),
        dimension_numbers=(((1,), (1,)), ((), ())),  # contract pooled-C with weight-C
        preferred_element_type=jnp.float32,
    )
    o_ref[...] = logits + b_ref[...]


def _choose_tile_n(n, bytes_per_sample, target_bytes=4 << 20):
    """Pick a batch tile that moves ~4 MiB of x per grid step, 8-aligned."""
    if n <= 8:
        return n
    t = min(n, max(1, target_bytes // max(bytes_per_sample, 1)))
    if t >= n:
        return n
    return min(n, max(8, (t // 8) * 8))


def base_head_forward_nhwc(x_nlc, weight, bias, *, global_pool="avg", tile_n=None):
    """x_nlc: (N, H*W, C) channels-last feature map (any float dtype).
    weight: (num_classes, C) torch nn.Linear layout; bias: (num_classes,)."""
    if global_pool not in ("avg", "max"):
        raise ValueError(f"unsupported global_pool: {global_pool}")
    N, HW, C = x_nlc.shape
    K = weight.shape[0]
    b2 = bias.reshape(1, K).astype(jnp.float32)

    bytes_per_sample = HW * C * x_nlc.dtype.itemsize
    if tile_n is None:
        tile_n = _choose_tile_n(N, bytes_per_sample)
    grid = (pl.cdiv(N, tile_n),)

    kernel = partial(_base_head_kernel, inv_hw=1.0 / float(HW), global_pool=global_pool)

    cost = pl.CostEstimate(
        flops=2 * N * C * K + N * C * HW,
        transcendentals=0,
        bytes_accessed=(N * bytes_per_sample
                        + K * C * weight.dtype.itemsize
                        + K * 4 + N * K * 4),
    )

    return pl.pallas_call(
        kernel,
        out_shape=jax.ShapeDtypeStruct((N, K), jnp.float32),
        grid=grid,
        in_specs=[
            # streamed, double-buffered feature-map tiles
            pl.BlockSpec((tile_n, HW, C), lambda i: (i, 0, 0)),
            # classifier weight + bias stay resident in VMEM across all steps
            pl.BlockSpec((K, C), lambda i: (0, 0)),
            pl.BlockSpec((1, K), lambda i: (0, 0)),
        ],
        out_specs=pl.BlockSpec((tile_n, K), lambda i: (i, 0)),
        compiler_params=pltpu.CompilerParams(
            dimension_semantics=("parallel",),  # lets v7x use both TensorCores
        ),
        cost_estimate=cost,
    )(x_nlc, weight, b2)
    # TODO(synk): tile the K axis too (128-multiple tiles) if num_classes is
    # large enough that the (K, C) weight cannot stay resident in VMEM.


def base_head_forward(x_nchw, weight, bias, *, global_pool="avg", tile_n=None):
    """NCHW adapter matching the PyTorch module's input layout.

    Layout plumbing only: a real pipeline should feed channels-last directly
    so no extra transpose pass is needed before the kernel."""
    N, C, H, W = x_nchw.shape
    x_nlc = jnp.transpose(x_nchw, (0, 2, 3, 1)).reshape(N, H * W, C)
    return base_head_forward_nhwc(
        x_nlc, weight, bias, global_pool=global_pool, tile_n=tile_n
    )


def init_base_head_params(key, num_classes, in_features, sigmoid_loss=True,
                          tresnet_init=False):
    """Matches BaseHead.init_weights."""
    if tresnet_init:
        w = 0.01 * jax.random.normal(key, (num_classes, in_features), dtype=jnp.float32)
    else:
        # nn.Linear weight: trunc_normal_(std=0.02), truncated to [-2, 2].
        w = 0.02 * jax.random.truncated_normal(
            key, -2.0, 2.0, (num_classes, in_features), dtype=jnp.float32
        )
    head_bias = -math.log(num_classes - 1) if sigmoid_loss else 0.0
    b = jnp.full((num_classes,), head_bias, dtype=jnp.float32)
    return w, b


if __name__ == "__main__":
    key = jax.random.PRNGKey(0)
    k_x, k_w, k_x2, k_w2 = jax.random.split(key, 4)

    # ---- Test 1: small shapes consistent with the module (f32, single tile) ----
    # backbone_feature_map_sizes = {'stage4': (spatial, channels)}; last_stage='stage4'
    N, C, H, W = 2, 4, 16, 16
    num_classes = 10
    features = {"stage4": jax.random.normal(k_x, (N, C, H, W), dtype=jnp.float32)}
    last_stage = "stage4"
    weight, bias = init_base_head_params(k_w, num_classes, C, sigmoid_loss=True)

    logits = base_head_forward(features[last_stage], weight, bias)
    logits = jax.block_until_ready(logits)

    ref = features[last_stage].mean(axis=(2, 3)) @ weight.T + bias
    assert logits.shape == (N, num_classes)
    assert jnp.allclose(logits, ref, atol=1e-4, rtol=1e-4)

    # ---- Test 2: bf16 feature map, lane-dense C=128, batch grid of 2 steps ----
    N2, C2, H2, W2 = 16, 128, 7, 7
    K2 = 16
    x2 = jax.random.normal(k_x2, (N2, C2, H2, W2), dtype=jnp.float32).astype(jnp.bfloat16)
    w2, b2 = init_base_head_params(k_w2, K2, C2, sigmoid_loss=True)

    logits2 = base_head_forward(x2, w2, b2, tile_n=8)
    logits2 = jax.block_until_ready(logits2)

    ref2 = x2.astype(jnp.float32).mean(axis=(2, 3)) @ w2.T + b2
    assert logits2.shape == (N2, K2)
    assert jnp.allclose(logits2, ref2, atol=2e-2, rtol=2e-2)

    print("KERNEL_OK")
</pallas_src>

<mosaic_0001>
module attributes {stable_mosaic.version = 11 : i64} {
  func.func @_base_head_kernel(%arg0: i32, %arg1: memref<2x256x4xf32, #tpu.memory_space<vmem>>, %arg2: memref<10x4xf32, #tpu.memory_space<vmem>>, %arg3: memref<1x10xf32, #tpu.memory_space<vmem>>, %arg4: memref<2x10xf32, #tpu.memory_space<vmem>>) attributes {dimension_semantics = [#tpu.dimension_semantics<parallel>], iteration_bounds = array<i64: 1>, scalar_prefetch = 0 : i64, scratch_operands = 0 : i64, tpu.core_type = #tpu.core_type<tc>, window_params = [{transform_indices = @transform_0, window_bounds = array<i64: 2, 256, 4>}, {pipeline_mode = #tpu.pipeline_mode<synchronous>, transform_indices = @transform_1, window_bounds = array<i64: 10, 4>}, {pipeline_mode = #tpu.pipeline_mode<synchronous>, transform_indices = @transform_2, window_bounds = array<i64: 1, 10>}, {transform_indices = @transform_3, window_bounds = array<i64: 2, 10>}]} {
    %c0 = arith.constant 0 : index
    %c0_0 = arith.constant 0 : index
    %c0_1 = arith.constant 0 : index
    %0 = vector.load %arg1[%c0, %c0_0, %c0_1] : memref<2x256x4xf32, #tpu.memory_space<vmem>>, vector<2x256x4xf32>
    %cst = arith.constant dense<0.000000e+00> : vector<2x4xf32>
    %1 = vector.multi_reduction <add>, %0, %cst [1] : vector<2x256x4xf32> to vector<2x4xf32>
    %cst_2 = arith.constant 3.906250e-03 : f32
    %2 = vector.broadcast %cst_2 : f32 to vector<2x4xf32>
    %3 = arith.mulf %1, %2 : vector<2x4xf32>
    %c0_3 = arith.constant 0 : index
    %c0_4 = arith.constant 0 : index
    %4 = vector.load %arg2[%c0_3, %c0_4] : memref<10x4xf32, #tpu.memory_space<vmem>>, vector<10x4xf32>
    %cst_5 = arith.constant dense<0.000000e+00> : vector<2x10xf32>
    %5 = tpu.matmul %3, %4, %cst_5 {dimension_numbers = #tpu.dot_dimension_numbers<[1], [1], [0], [0], [0, 0, 1, 0], [], []>} : vector<2x4xf32>, vector<10x4xf32>, vector<2x10xf32> -> vector<2x10xf32>
    %c0_6 = arith.constant 0 : index
    %c0_7 = arith.constant 0 : index
    %6 = vector.load %arg3[%c0_6, %c0_7] : memref<1x10xf32, #tpu.memory_space<vmem>>, vector<1x10xf32>
    %7 = vector.broadcast %6 : vector<1x10xf32> to vector<2x10xf32>
    %8 = arith.addf %5, %7 : vector<2x10xf32>
    %c0_8 = arith.constant 0 : index
    %c0_9 = arith.constant 0 : index
    %9 = vector.load %arg4[%c0_8, %c0_9] : memref<2x10xf32, #tpu.memory_space<vmem>>, vector<2x10xf32>
    tpu.vector_store %arg4[%c0_8, %c0_9], %8 {strides = array<i32>} : memref<2x10xf32, #tpu.memory_space<vmem>>, vector<2x10xf32>,
    return
  }
  func.func @transform_0(%arg0: i32) -> (i32, i32, i32) {
    %c0_i32 = arith.constant 0 : i32
    %c0_i32_0 = arith.constant 0 : i32
    %c0_i32_1 = arith.constant 0 : i32
    return %arg0, %c0_i32, %c0_i32_0 : i32, i32, i32
  }
  func.func @transform_1(%arg0: i32) -> (i32, i32) {
    %c0_i32 = arith.constant 0 : i32
    %c0_i32_0 = arith.constant 0 : i32
    %c0_i32_1 = arith.constant 0 : i32
    return %c0_i32, %c0_i32_0 : i32, i32
  }
  func.func @transform_2(%arg0: i32) -> (i32, i32) {
    %c0_i32 = arith.constant 0 : i32
    %c0_i32_0 = arith.constant 0 : i32
    %c0_i32_1 = arith.constant 0 : i32
    return %c0_i32, %c0_i32_0 : i32, i32
  }
  func.func @transform_3(%arg0: i32) -> (i32, i32) {
    %c0_i32 = arith.constant 0 : i32
    %c0_i32_0 = arith.constant 0 : i32
    return %arg0, %c0_i32 : i32, i32
  }
}

</mosaic_0001>

<llo_original>
// kernel: tpu_custom_call.1
$region0: #{tpu_custom_call.1}
  #allocation0 [shape = 'u32[]', space=smem, size = 0x4, offset = 0x4, fixed_abs, tag = 'smem constant byte address 0x4 - core index']
  #allocation1 [shape = 'u32[144,128]{1,0:T(1,128)}', space=vmem, size = 0x12000, scoped, tag = 'internal scratch']
  %s0 = inlined_call_operand.vmem [shape: f32[2,256,4], index: 0, kind: input, shape index: {}]
  %s1 = inlined_call_operand.vmem [shape: f32[10,4], index: 1, kind: input, shape index: {}]
  %s2 = inlined_call_operand.vmem [shape: f32[1,10], index: 2, kind: input, shape index: {}]
  %s3 = inlined_call_operand.hbm [shape: f32[2,10], index: 3, kind: output, shape index: {}]
  %s4 = sld [smem:[#allocation0]]
  $region22: #{tpu_custom_call.1} parent=0
    _
  %s6 = ssub.s32 1, %s4
  %s7 = scalar_select 0, %s6, %s4
  $region1: #{tpu_custom_call.1} parent=0
    #allocation2 [shape = 'u8[1024]{0}', space=vmem, size = 0x400, scoped, tag = 'output window, operand 0, single buffered']
    #allocation3 [shape = 's32[1]{0}', space=sflag, size = 0x4, scoped, tag = 'scoped memory for tpu_custom_call.1']
    %8 = vsyncpa [#allocation3], 0
    // Predicated region
    $region2: #{tpu_custom_call.1} parent=1 // pred_check
      _
    $region3: #{tpu_custom_call.1} parent=1 // pred_check_branch
      %10 = sbr.rel (0) target = $region5
    $region4: #{tpu_custom_call.1} parent=1 // pred_region
      _
    $region5: #{tpu_custom_call.1} parent=1 // pred_fallthru
      _
    // Predicated region
    $region6: #{tpu_custom_call.1} parent=1 // pred_check
      _
    $region7: #{tpu_custom_call.1} parent=1 // pred_check_branch
      %12 = sbr.rel (0) target = $region9
    $region8: #{tpu_custom_call.1} parent=1 // pred_region
      _
    $region9: #{tpu_custom_call.1} parent=1 // pred_fallthru
      _
    // Predicated region
    $region10: #{tpu_custom_call.1} parent=1 // pred_check
      _
    $region11: #{tpu_custom_call.1} parent=1 // pred_check_branch
      %14 = sbr.rel (0) target = $region13
    $region12: #{tpu_custom_call.1} parent=1 // pred_region
      _
    $region13: #{tpu_custom_call.1} parent=1 // pred_fallthru
      _
    %v15 = vld [vmem:[%s0] sm:$0xff]
    %v16 = vld [vmem:[%s0 + $0x8] sm:$0xff]
    %v17 = vld [vmem:[%s0 + $0x10] sm:$0xff]
    %v18 = vld [vmem:[%s0 + $0x18] sm:$0xff]
    %v19 = vld [vmem:[%s0 + $0x20] sm:$0xff]
    %v20 = vld [vmem:[%s0 + $0x28] sm:$0xff]
    %v21 = vld [vmem:[%s0 + $0x30] sm:$0xff]
    %v22 = vld [vmem:[%s0 + $0x38] sm:$0xff]
    %v23 = vld [vmem:[%s0 + $0x40] sm:$0xff]
    %v24 = vld [vmem:[%s0 + $0x48] sm:$0xff]
    %v25 = vld [vmem:[%s0 + $0x50] sm:$0xff]
    %v26 = vld [vmem:[%s0 + $0x58] sm:$0xff]
    %v27 = vld [vmem:[%s0 + $0x60] sm:$0xff]
    %v28 = vld [vmem:[%s0 + $0x68] sm:$0xff]
    %v29 = vld [vmem:[%s0 + $0x70] sm:$0xff]
    %v30 = vld [vmem:[%s0 + $0x78] sm:$0xff]
    %v31 = vld [vmem:[%s0 + $0x80] sm:$0xff]
    %v32 = vld [vmem:[%s0 + $0x88] sm:$0xff]
    %v33 = vld [vmem:[%s0 + $0x90] sm:$0xff]
    %v34 = vld [vmem:[%s0 + $0x98] sm:$0xff]
    %v35 = vld [vmem:[%s0 + $0xa0] sm:$0xff]
    %v36 = vld [vmem:[%s0 + $0xa8] sm:$0xff]
    %v37 = vld [vmem:[%s0 + $0xb0] sm:$0xff]
    %v38 = vld [vmem:[%s0 + $0xb8] sm:$0xff]
    %v39 = vld [vmem:[%s0 + $0xc0] sm:$0xff]
    %v40 = vld [vmem:[%s0 + $0xc8] sm:$0xff]
    %v41 = vld [vmem:[%s0 + $0xd0] sm:$0xff]
    %v42 = vld [vmem:[%s0 + $0xd8] sm:$0xff]
    %v43 = vld [vmem:[%s0 + $0xe0] sm:$0xff]
    %v44 = vld [vmem:[%s0 + $0xe8] sm:$0xff]
    %v45 = vld [vmem:[%s0 + $0xf0] sm:$0xff]
    %v46 = vld [vmem:[%s0 + $0xf8] sm:$0xff]
    %v47 = vld [vmem:[%s0 + $0x100] sm:$0xff]
    %v48 = vld [vmem:[%s0 + $0x108] sm:$0xff]
    %v49 = vld [vmem:[%s0 + $0x110] sm:$0xff]
    %v50 = vld [vmem:[%s0 + $0x118] sm:$0xff]
    %v51 = vld [vmem:[%s0 + $0x120] sm:$0xff]
    %v52 = vld [vmem:[%s0 + $0x128] sm:$0xff]
    %v53 = vld [vmem:[%s0 + $0x130] sm:$0xff]
    %v54 = vld [vmem:[%s0 + $0x138] sm:$0xff]
    %v55 = vld [vmem:[%s0 + $0x140] sm:$0xff]
    %v56 = vld [vmem:[%s0 + $0x148] sm:$0xff]
    %v57 = vld [vmem:[%s0 + $0x150] sm:$0xff]
    %v58 = vld [vmem:[%s0 + $0x158] sm:$0xff]
    %v59 = vld [vmem:[%s0 + $0x160] sm:$0xff]
    %v60 = vld [vmem:[%s0 + $0x168] sm:$0xff]
    %v61 = vld [vmem:[%s0 + $0x170] sm:$0xff]
    %v62 = vld [vmem:[%s0 + $0x178] sm:$0xff]
    %v63 = vld [vmem:[%s0 + $0x180] sm:$0xff]
    %v64 = vld [vmem:[%s0 + $0x188] sm:$0xff]
    %v65 = vld [vmem:[%s0 + $0x190] sm:$0xff]
    %v66 = vld [vmem:[%s0 + $0x198] sm:$0xff]
    %v67 = vld [vmem:[%s0 + $0x1a0] sm:$0xff]
    %v68 = vld [vmem:[%s0 + $0x1a8] sm:$0xff]
    %v69 = vld [vmem:[%s0 + $0x1b0] sm:$0xff]
    %v70 = vld [vmem:[%s0 + $0x1b8] sm:$0xff]
    %v71 = vld [vmem:[%s0 + $0x1c0] sm:$0xff]
    %v72 = vld [vmem:[%s0 + $0x1c8] sm:$0xff]
    %v73 = vld [vmem:[%s0 + $0x1d0] sm:$0xff]
    %v74 = vld [vmem:[%s0 + $0x1d8] sm:$0xff]
    %v75 = vld [vmem:[%s0 + $0x1e0] sm:$0xff]
    %v76 = vld [vmem:[%s0 + $0x1e8] sm:$0xff]
    %v77 = vld [vmem:[%s0 + $0x1f0] sm:$0xff]
    %v78 = vld [vmem:[%s0 + $0x1f8] sm:$0xff]
    %vm79 = vcmask 31744
    %v80 = vsel %vm79, %v15, 0.0
    %v81 = vsel %vm79, %v16, 0.0
    %v82 = vadd.f32 %v80, %v81
    %v83 = vsel %vm79, %v17, 0.0
    %v84 = vadd.f32 %v82, %v83
    %v85 = vsel %vm79, %v18, 0.0
    %v86 = vadd.f32 %v84, %v85
    %v87 = vsel %vm79, %v19, 0.0
    %v88 = vadd.f32 %v86, %v87
    %v89 = vsel %vm79, %v20, 0.0
    %v90 = vadd.f32 %v88, %v89
    %v91 = vsel %vm79, %v21, 0.0
    %v92 = vadd.f32 %v90, %v91
    %v93 = vsel %vm79, %v22, 0.0
    %v94 = vadd.f32 %v92, %v93
    %v95 = vsel %vm79, %v23, 0.0
    %v96 = vadd.f32 %v94, %v95
    %v97 = vsel %vm79, %v24, 0.0
    %v98 = vadd.f32 %v96, %v97
    %v99 = vsel %vm79, %v25, 0.0
    %v100 = vadd.f32 %v98, %v99
    %v101 = vsel %vm79, %v26, 0.0
    %v102 = vadd.f32 %v100, %v101
    %v103 = vsel %vm79, %v27, 0.0
    %v104 = vadd.f32 %v102, %v103
    %v105 = vsel %vm79, %v28, 0.0
    %v106 = vadd.f32 %v104, %v105
    %v107 = vsel %vm79, %v29, 0.0
    %v108 = vadd.f32 %v106, %v107
    %v109 = vsel %vm79, %v30, 0.0
    %v110 = vadd.f32 %v108, %v109
    %v111 = vsel %vm79, %v31, 0.0
    %v112 = vadd.f32 %v110, %v111
    %v113 = vsel %vm79, %v32, 0.0
    %v114 = vadd.f32 %v112, %v113
    %v115 = vsel %vm79, %v33, 0.0
    %v116 = vadd.f32 %v114, %v115
    %v117 = vsel %vm79, %v34, 0.0
    %v118 = vadd.f32 %v116, %v117
    %v119 = vsel %vm79, %v35, 0.0
    %v120 = vadd.f32 %v118, %v119
    %v121 = vsel %vm79, %v36, 0.0
    %v122 = vadd.f32 %v120, %v121
    %v123 = vsel %vm79, %v37, 0.0
    %v124 = vadd.f32 %v122, %v123
    %v125 = vsel %vm79, %v38, 0.0
    %v126 = vadd.f32 %v124, %v125
    %v127 = vsel %vm79, %v39, 0.0
    %v128 = vadd.f32 %v126, %v127
    %v129 = vsel %vm79, %v40, 0.0
    %v130 = vadd.f32 %v128, %v129
    %v131 = vsel %vm79, %v41, 0.0
    %v132 = vadd.f32 %v130, %v131
    %v133 = vsel %vm79, %v42, 0.0
    %v134 = vadd.f32 %v132, %v133
    %v135 = vsel %vm79, %v43, 0.0
    %v136 = vadd.f32 %v134, %v135
    %v137 = vsel %vm79, %v44, 0.0
    %v138 = vadd.f32 %v136, %v137
    %v139 = vsel %vm79, %v45, 0.0
    %v140 = vadd.f32 %v138, %v139
    %v141 = vsel %vm79, %v46, 0.0
    %v142 = vadd.f32 %v140, %v141
    %v143 = vrot.slane %v142, 4
    %v144 = vadd.f32 %v142, %v143
    %v145 = vrot.slane %v144, 2
    %v146 = vadd.f32 %v144, %v145
    %v147 = vrot.slane %v146, 1
    %v148 = vadd.f32 %v146, %v147
    %v149 = vsel %vm79, %v47, 0.0
    %v150 = vsel %vm79, %v48, 0.0
    %v151 = vadd.f32 %v149, %v150
    %v152 = vsel %vm79, %v49, 0.0
    %v153 = vadd.f32 %v151, %v152
    %v154 = vsel %vm79, %v50, 0.0
    %v155 = vadd.f32 %v153, %v154
    %v156 = vsel %vm79, %v51, 0.0
    %v157 = vadd.f32 %v155, %v156
    %v158 = vsel %vm79, %v52, 0.0
    %v159 = vadd.f32 %v157, %v158
    %v160 = vsel %vm79, %v53, 0.0
    %v161 = vadd.f32 %v159, %v160
    %v162 = vsel %vm79, %v54, 0.0
    %v163 = vadd.f32 %v161, %v162
    %v164 = vsel %vm79, %v55, 0.0
    %v165 = vadd.f32 %v163, %v164
    %v166 = vsel %vm79, %v56, 0.0
    %v167 = vadd.f32 %v165, %v166
    %v168 = vsel %vm79, %v57, 0.0
    %v169 = vadd.f32 %v167, %v168
    %v170 = vsel %vm79, %v58, 0.0
    %v171 = vadd.f32 %v169, %v170
    %v172 = vsel %vm79, %v59, 0.0
    %v173 = vadd.f32 %v171, %v172
    %v174 = vsel %vm79, %v60, 0.0
    %v175 = vadd.f32 %v173, %v174
    %v176 = vsel %vm79, %v61, 0.0
    %v177 = vadd.f32 %v175, %v176
    %v178 = vsel %vm79, %v62, 0.0
    %v179 = vadd.f32 %v177, %v178
    %v180 = vsel %vm79, %v63, 0.0
    %v181 = vadd.f32 %v179, %v180
    %v182 = vsel %vm79, %v64, 0.0
    %v183 = vadd.f32 %v181, %v182
    %v184 = vsel %vm79, %v65, 0.0
    %v185 = vadd.f32 %v183, %v184
    %v186 = vsel %vm79, %v66, 0.0
    %v187 = vadd.f32 %v185, %v186
    %v188 = vsel %vm79, %v67, 0.0
    %v189 = vadd.f32 %v187, %v188
    %v190 = vsel %vm79, %v68, 0.0
    %v191 = vadd.f32 %v189, %v190
    %v192 = vsel %vm79, %v69, 0.0
    %v193 = vadd.f32 %v191, %v192
    %v194 = vsel %vm79, %v70, 0.0
    %v195 = vadd.f32 %v193, %v194
    %v196 = vsel %vm79, %v71, 0.0
    %v197 = vadd.f32 %v195, %v196
    %v198 = vsel %vm79, %v72, 0.0
    %v199 = vadd.f32 %v197, %v198
    %v200 = vsel %vm79, %v73, 0.0
    %v201 = vadd.f32 %v199, %v200
    %v202 = vsel %vm79, %v74, 0.0
    %v203 = vadd.f32 %v201, %v202
    %v204 = vsel %vm79, %v75, 0.0
    %v205 = vadd.f32 %v203, %v204
    %v206 = vsel %vm79, %v76, 0.0
    %v207 = vadd.f32 %v205, %v206
    %v208 = vsel %vm79, %v77, 0.0
    %v209 = vadd.f32 %v207, %v208
    %v210 = vsel %vm79, %v78, 0.0
    %v211 = vadd.f32 %v209, %v210
    %v212 = vrot.slane %v211, 4
    %v213 = vadd.f32 %v211, %v212
    %v214 = vrot.slane %v213, 2
    %v215 = vadd.f32 %v213, %v214
    %v216 = vrot.slane %v215, 1
    %v217 = vadd.f32 %v215, %v216
    %v218 = vmul.f32 %v148, 0.00390625
    %v219 = vmul.f32 %v217, 0.00390625
    %v220 = vld [vmem:[%s1] sm:$0xff]
    %v221 = vld [vmem:[%s1 + $0x8] sm:$0x3]
    %v222 = vld [vmem:[%s2] sm:$0x1]
    %v224 = vlaneseq
    %v225 = vshrl.u32 %v224, 7
    %v226 = vsub.s32 0, %v225
    %v227 = vrot.slane %v222, %v226
    %vm231 = vcmask 1041409
    %v232 = vsel %vm231, %v219, %v218
    %v233 = vsel %vm79, %v232, 0
    %v236 = vsel %vm79, %v220, 0
    %v239 = vsel %vm79, %v221, 0
    %241 = vmatprep.subr.mxu0 0.0
    %242 = vmatpush1.xpose.msra.mxu0 %v236
    %243 = vmatprep.subr.mxu0 0.0
    %244 = vmatpush1.xpose.msra.mxu0 %v239
    %245 = vmatprep.subr.mxu0 0.0
    %246 = vmatpush1.xpose.msra.mxu0 0.0
    %247 = vmatprep.subr.mxu0 0.0
    %248 = vmatpush1.xpose.msra.mxu0 0.0
    %249 = vmatprep.subr.mxu0 0.0
    %250 = vmatpush1.xpose.msra.mxu0 0.0
    %251 = vmatprep.subr.mxu0 0.0
    %252 = vmatpush1.xpose.msra.mxu0 0.0
    %253 = vmatprep.subr.mxu0 0.0
    %254 = vmatpush1.xpose.msra.mxu0 0.0
    %255 = vmatprep.subr.mxu0 0.0
    %256 = vmatpush1.xpose.msra.mxu0 0.0
    %257 = vmatprep.subr.mxu0 0.0
    %258 = vmatpush1.xpose.msra.mxu0 0.0
    %259 = vmatprep.subr.mxu0 0.0
    %260 = vmatpush1.xpose.msra.mxu0 0.0
    %261 = vmatprep.subr.mxu0 0.0
    %262 = vmatpush1.xpose.msra.mxu0 0.0
    %263 = vmatprep.subr.mxu0 0.0
    %264 = vmatpush1.xpose.msra.mxu0 0.0
    %265 = vmatprep.subr.mxu0 0.0
    %266 = vmatpush1.xpose.msra.mxu0 0.0
    %267 = vmatprep.subr.mxu0 0.0
    %268 = vmatpush1.xpose.msra.mxu0 0.0
    %269 = vmatprep.subr.mxu0 0.0
    %270 = vmatpush1.xpose.msra.mxu0 0.0
    %271 = vmatprep.subr.mxu0 0.0
    %272 = vmatpush1.xpose.msra.mxu0 0.0
    %273 = vmatprep.subr.mxu0 0.0
    %274 = vmatpush1.xpose.msra.mxu0 0.0
    %275 = vmatprep.subr.mxu0 0.0
    %276 = vmatpush1.xpose.msra.mxu0 0.0
    %277 = vmatprep.subr.mxu0 0.0
    %278 = vmatpush1.xpose.msra.mxu0 0.0
    %279 = vmatprep.subr.mxu0 0.0
    %280 = vmatpush1.xpose.msra.mxu0 0.0
    %281 = vmatprep.subr.mxu0 0.0
    %282 = vmatpush1.xpose.msra.mxu0 0.0
    %283 = vmatprep.subr.mxu0 0.0
    %284 = vmatpush1.xpose.msra.mxu0 0.0
    %285 = vmatprep.subr.mxu0 0.0
    %286 = vmatpush1.xpose.msra.mxu0 0.0
    %287 = vmatprep.subr.mxu0 0.0
    %288 = vmatpush1.xpose.msra.mxu0 0.0
    %289 = vmatprep.subr.mxu0 0.0
    %290 = vmatpush1.xpose.msra.mxu0 0.0
    %291 = vmatprep.subr.mxu0 0.0
    %292 = vmatpush1.xpose.msra.mxu0 0.0
    %293 = vmatprep.subr.mxu0 0.0
    %294 = vmatpush1.xpose.msra.mxu0 0.0
    %295 = vmatprep.subr.mxu0 0.0
    %296 = vmatpush1.xpose.msra.mxu0 0.0
    %297 = vmatprep.subr.mxu0 0.0
    %298 = vmatpush1.xpose.msra.mxu0 0.0
    %299 = vmatprep.subr.mxu0 0.0
    %300 = vmatpush1.xpose.msra.mxu0 0.0
    %301 = vmatprep.subr.mxu0 0.0
    %302 = vmatpush1.xpose.msra.mxu0 0.0
    %303 = vmatprep.subr.mxu0 0.0
    %304 = vmatpush1.xpose.msra.mxu0 0.0
    %305 = vmatprep.mubr.f32.mxu0 0.0
    %306 = vmatmul.mubr.f32.gmra.mrb[0].mxu0 %v233
    %v307 = vpop.f32.mrb[0].mxu0
    %v308 = vadd.f32 %v227, %v307
    %v309 = vpop.f32.mrb[0].mxu0
    %310 = vdwg.mxu0
    %vm311 = vcmask 74752
    %312 = vst.msk [vmem:[#allocation2] sm:$0x3] %vm311, %v308
    // Predicated region
    $region14: #{tpu_custom_call.1} parent=1 // pred_check
      _
    $region15: #{tpu_custom_call.1} parent=1 // pred_check_branch
      %314 = sbr.rel (0) target = $region17
    $region16: #{tpu_custom_call.1} parent=1 // pred_region
      %s316 = ssub.s32 32, 32
      %317 = vsyncadd [#allocation3], %s316
      %s319 = sshll.u32 [#allocation2], 4
      %s320 = int_to_ptr.vmem [resolvable:$true] %s319
      %322 = dma.vmem_to_hbm [thread:$0]  %s320, 32, %s3, [#allocation3]
    $region17: #{tpu_custom_call.1} parent=1 // pred_fallthru
      _
    // Predicated region
    $region18: #{tpu_custom_call.1} parent=1 // pred_check
      _
    $region19: #{tpu_custom_call.1} parent=1 // pred_check_branch
      %324 = sbr.rel (0) target = $region21
    $region20: #{tpu_custom_call.1} parent=1 // pred_region
      %325 = dma.done [#allocation3], 32
    $region21: #{tpu_custom_call.1} parent=1 // pred_fallthru
      _
    %326 = vsyncpa [#allocation3], 1

</llo_original>
